<compile_context>
chip_gen: v7x
topology: tpu7x:2x2x1
jax: 0.10.0
libtpu: 0.0.40
codegen_flags: <defaults>
</compile_context>

<pallas_src>
import functools

import jax
import jax.numpy as jnp
from jax.experimental import pallas as pl
from jax.experimental.pallas import tpu as pltpu


def _round_up(x, m):
    return ((x + m - 1) // m) * m


def _pick_divisor(n, candidates):
    for c in candidates:
        if c <= n and n % c == 0:
            return c
    return n


def _spectral_contract_kernel(x_ref, w_ref, o_ref, *, ci_blk):
    """Complex channel contraction, accumulated over the Ci grid axis.

    x_ref: (2, B, ci_blk, Kt)    [0]=real, [1]=imag
    w_ref: (2, ci_blk, Co_t, Kt)
    o_ref: (2, B, Co_t, Kt)      f32, resident across the ci (reduction) axis
    """
    ci_step = pl.program_id(2)

    @pl.when(ci_step == 0)
    def _init():
        o_ref[...] = jnp.zeros_like(o_ref)

    # Unrolled accumulation over the input-channel block. Never materializes a
    # (B, Ci, Co, K) temporary; per-iteration temporaries are (B, Co_t, Kt).
    for i in range(ci_blk):
        xr = x_ref[0, :, i, :][:, None, :]      # (B, 1, Kt)
        xi = x_ref[1, :, i, :][:, None, :]
        wr = w_ref[0, i][None, :, :]            # (1, Co_t, Kt)
        wi = w_ref[1, i][None, :, :]
        o_ref[0] += xr * wr - xi * wi
        o_ref[1] += xr * wi + xi * wr


def _spectral_contract(x_ri, w_ri, *, co_tile, k_tile, ci_blk):
    """x_ri: (2, B, Ci, Lp), w_ri: (2, Ci, Co, Lp) -> (2, B, Co, Lp) f32."""
    _, B, Ci, Lp = x_ri.shape
    Co = w_ri.shape[2]
    n_co = Co // co_tile
    n_k = Lp // k_tile
    n_ci = Ci // ci_blk

    kernel = functools.partial(_spectral_contract_kernel, ci_blk=ci_blk)

    x_spec = pl.BlockSpec((2, B, ci_blk, k_tile),
                          lambda co, k, ci: (0, 0, ci, k))
    w_spec = pl.BlockSpec((2, ci_blk, co_tile, k_tile),
                          lambda co, k, ci: (0, ci, co, k))
    o_spec = pl.BlockSpec((2, B, co_tile, k_tile),
                          lambda co, k, ci: (0, 0, co, k))

    return pl.pallas_call(
        kernel,
        out_shape=jax.ShapeDtypeStruct((2, B, Co, Lp), jnp.float32),
        grid_spec=pltpu.PrefetchScalarGridSpec(
            num_scalar_prefetch=0,
            grid=(n_co, n_k, n_ci),            # reduction (ci) axis last
            in_specs=[x_spec, w_spec],
            out_specs=o_spec,
        ),
        compiler_params=pltpu.CompilerParams(
            dimension_semantics=("parallel", "parallel", "arbitrary"),
            vmem_limit_bytes=32 * 1024 * 1024,
        ),
    )(x_ri, w_ri)


class SpectralConv3d:
    """JAX/Pallas port of the PyTorch SpectralConv3d module (forward only)."""

    def __init__(self, in_channels, out_channels, modes1, modes2, modes3, key):
        self.in_channels = in_channels
        self.out_channels = out_channels
        self.modes1 = modes1
        self.modes2 = modes2
        self.modes3 = modes3

        # --- weights (match torch.rand(..., dtype=cfloat) * scale) ---
        scale = 1.0 / (in_channels * out_channels)
        shape = (in_channels, out_channels, modes1, modes2, modes3)
        keys = jax.random.split(key, 8)

        def cplx(kr, ki):
            re = jax.random.uniform(kr, shape, dtype=jnp.float32)
            im = jax.random.uniform(ki, shape, dtype=jnp.float32)
            return scale * (re + 1j * im).astype(jnp.complex64)

        self.weights1 = cplx(keys[0], keys[1])
        self.weights2 = cplx(keys[2], keys[3])
        self.weights3 = cplx(keys[4], keys[5])
        self.weights4 = cplx(keys[6], keys[7])

        # --- tiling decisions (static per module) ---
        self.K = modes1 * modes2 * modes3
        self.L = 4 * self.K                              # corners folded into lanes
        k_tile = min(1024, _round_up(self.L, 128))       # lane tile, multiple of 128
        self.Lp = _round_up(self.L, k_tile)              # padded lane extent
        self.k_tile = k_tile
        self.co_tile = _pick_divisor(out_channels, (64, 32, 16, 8))
        self.ci_blk = 8 if in_channels % 8 == 0 else in_channels

        # Pre-pack weights once: (2, Ci, Co, Lp) f32 (real/imag stacked).
        w_flat = jnp.concatenate(
            [w.reshape(in_channels, out_channels, self.K)
             for w in (self.weights1, self.weights2, self.weights3, self.weights4)],
            axis=-1)
        w_flat = jnp.pad(w_flat, ((0, 0), (0, 0), (0, self.Lp - self.L)))
        self._w_ri = jnp.stack(
            [jnp.real(w_flat), jnp.imag(w_flat)], axis=0).astype(jnp.float32)

    def __call__(self, x):
        B, Ci, X, Y, Z = x.shape
        m1, m2, m3 = self.modes1, self.modes2, self.modes3
        Co = self.out_channels
        Zr = Z // 2 + 1
        K, L, Lp = self.K, self.L, self.Lp

        # FFT (glue, no Pallas equivalent).
        x_ft = jnp.fft.rfftn(x, axes=(-3, -2, -1))       # (B, Ci, X, Y, Zr) c64

        # Gather the 4 corner mode blocks and fold them into one lane axis.
        corners = [
            x_ft[:, :, :m1, :m2, :m3],
            x_ft[:, :, -m1:, :m2, :m3],
            x_ft[:, :, :m1, -m2:, :m3],
            x_ft[:, :, -m1:, -m2:, :m3],
        ]
        x_flat = jnp.concatenate([c.reshape(B, Ci, K) for c in corners], axis=-1)
        x_flat = jnp.pad(x_flat, ((0, 0), (0, 0), (0, Lp - L)))
        x_ri = jnp.stack(
            [jnp.real(x_flat), jnp.imag(x_flat)], axis=0).astype(jnp.float32)

        # Pallas channel contraction over all 4 corners at once.
        out_ri = _spectral_contract(
            x_ri, self._w_ri,
            co_tile=self.co_tile, k_tile=self.k_tile, ci_blk=self.ci_blk)

        out_c = (out_ri[0] + 1j * out_ri[1]).astype(jnp.complex64)[:, :, :L]
        out_blocks = out_c.reshape(B, Co, 4, m1, m2, m3)

        # Scatter the 4 corners back into the zero-initialized spectrum.
        # TODO(synk): fuse the corner gather/scatter into the Pallas kernel via
        # bitcast + index_map + input_output_aliases to cut the extra HBM passes.
        out_ft = jnp.zeros((B, Co, X, Y, Zr), dtype=jnp.complex64)
        out_ft = out_ft.at[:, :, :m1, :m2, :m3].set(out_blocks[:, :, 0])
        out_ft = out_ft.at[:, :, X - m1:, :m2, :m3].set(out_blocks[:, :, 1])
        out_ft = out_ft.at[:, :, :m1, Y - m2:, :m3].set(out_blocks[:, :, 2])
        out_ft = out_ft.at[:, :, X - m1:, Y - m2:, :m3].set(out_blocks[:, :, 3])

        # Inverse FFT (glue).
        return jnp.fft.irfftn(out_ft, s=(X, Y, Z), axes=(-3, -2, -1))


def _reference_forward(module, x):
    """Pure-JAX reference (no Pallas) for a correctness check."""
    B, Ci, X, Y, Z = x.shape
    m1, m2, m3 = module.modes1, module.modes2, module.modes3
    Co = module.out_channels
    Zr = Z // 2 + 1
    x_ft = jnp.fft.rfftn(x, axes=(-3, -2, -1))
    out_ft = jnp.zeros((B, Co, X, Y, Zr), dtype=jnp.complex64)
    cm = lambda a, w: jnp.einsum('bixyz,ioxyz->boxyz', a, w)
    out_ft = out_ft.at[:, :, :m1, :m2, :m3].set(
        cm(x_ft[:, :, :m1, :m2, :m3], module.weights1))
    out_ft = out_ft.at[:, :, X - m1:, :m2, :m3].set(
        cm(x_ft[:, :, -m1:, :m2, :m3], module.weights2))
    out_ft = out_ft.at[:, :, :m1, Y - m2:, :m3].set(
        cm(x_ft[:, :, :m1, -m2:, :m3], module.weights3))
    out_ft = out_ft.at[:, :, X - m1:, Y - m2:, :m3].set(
        cm(x_ft[:, :, -m1:, -m2:, :m3], module.weights4))
    return jnp.fft.irfftn(out_ft, s=(X, Y, Z), axes=(-3, -2, -1))


if __name__ == "__main__":
    key = jax.random.PRNGKey(0)
    k_w, k_x = jax.random.split(key)

    B, Ci, Co = 2, 4, 4
    X, Y, Z = 16, 16, 16
    modes1, modes2, modes3 = 4, 4, 4

    module = SpectralConv3d(Ci, Co, modes1, modes2, modes3, k_w)
    x = jax.random.normal(k_x, (B, Ci, X, Y, Z), dtype=jnp.float32)

    out = jax.jit(module.__call__)(x)
    out = jax.block_until_ready(out)

    ref = _reference_forward(module, x)
    assert out.shape == (B, Co, X, Y, Z)
    assert jnp.allclose(out, ref, atol=1e-4, rtol=1e-4)

    print("KERNEL_OK")
</pallas_src>

<mosaic_0001>
module attributes {stable_mosaic.version = 11 : i64} {
  func.func @_spectral_contract_kernel(%arg0: i32, %arg1: i32, %arg2: i32, %arg3: memref<2x2x4x256xf32, #tpu.memory_space<vmem>>, %arg4: memref<2x4x4x256xf32, #tpu.memory_space<vmem>>, %arg5: memref<2x2x4x256xf32, #tpu.memory_space<vmem>>) attributes {dimension_semantics = [#tpu.dimension_semantics<parallel>, #tpu.dimension_semantics<parallel>, #tpu.dimension_semantics<arbitrary>], iteration_bounds = array<i64: 1, 1, 1>, scalar_prefetch = 0 : i64, scratch_operands = 0 : i64, tpu.core_type = #tpu.core_type<tc>, window_params = [{transform_indices = @transform_0, window_bounds = array<i64: 2, 2, 4, 256>}, {transform_indices = @transform_1, window_bounds = array<i64: 2, 4, 4, 256>}, {transform_indices = @transform_2, window_bounds = array<i64: 2, 2, 4, 256>}]} {
    %c0_i32 = arith.constant 0 : i32
    %0 = arith.cmpi eq, %arg2, %c0_i32 : i32
    %1 = arith.extui %0 : i1 to i32
    %c0_i32_0 = arith.constant 0 : i32
    %2 = arith.cmpi ne, %1, %c0_i32_0 : i32
    scf.if %2 {
      %cst = arith.constant 0.000000e+00 : f32
      %155 = vector.broadcast %cst : f32 to vector<2x2x4x256xf32>
      %c0_125 = arith.constant 0 : index
      %c0_126 = arith.constant 0 : index
      %c0_127 = arith.constant 0 : index
      %c0_128 = arith.constant 0 : index
      %156 = vector.load %arg5[%c0_125, %c0_126, %c0_127, %c0_128] : memref<2x2x4x256xf32, #tpu.memory_space<vmem>>, vector<2x2x4x256xf32>
      tpu.vector_store %arg5[%c0_125, %c0_126, %c0_127, %c0_128], %155 {strides = array<i32>} : memref<2x2x4x256xf32, #tpu.memory_space<vmem>>, vector<2x2x4x256xf32>,
    } else {
    }
    %c0 = arith.constant 0 : index
    %c0_1 = arith.constant 0 : index
    %c0_2 = arith.constant 0 : index
    %c0_3 = arith.constant 0 : index
    %3 = vector.load %arg3[%c0, %c0_1, %c0_2, %c0_3] : memref<2x2x4x256xf32, #tpu.memory_space<vmem>>, vector<1x2x1x256xf32>
    %4 = vector.shape_cast %3 : vector<1x2x1x256xf32> to vector<2x256xf32>
    %5 = vector.shape_cast %4 : vector<2x256xf32> to vector<2x1x256xf32>
    %c1 = arith.constant 1 : index
    %c0_4 = arith.constant 0 : index
    %c0_5 = arith.constant 0 : index
    %c0_6 = arith.constant 0 : index
    %6 = vector.load %arg3[%c1, %c0_4, %c0_5, %c0_6] : memref<2x2x4x256xf32, #tpu.memory_space<vmem>>, vector<1x2x1x256xf32>
    %7 = vector.shape_cast %6 : vector<1x2x1x256xf32> to vector<2x256xf32>
    %8 = vector.shape_cast %7 : vector<2x256xf32> to vector<2x1x256xf32>
    %c0_7 = arith.constant 0 : index
    %c0_8 = arith.constant 0 : index
    %c0_9 = arith.constant 0 : index
    %c0_10 = arith.constant 0 : index
    %9 = vector.load %arg4[%c0_7, %c0_8, %c0_9, %c0_10] : memref<2x4x4x256xf32, #tpu.memory_space<vmem>>, vector<1x1x4x256xf32>
    %10 = vector.shape_cast %9 : vector<1x1x4x256xf32> to vector<4x256xf32>
    %11 = vector.shape_cast %10 : vector<4x256xf32> to vector<1x4x256xf32>
    %c1_11 = arith.constant 1 : index
    %c0_12 = arith.constant 0 : index
    %c0_13 = arith.constant 0 : index
    %c0_14 = arith.constant 0 : index
    %12 = vector.load %arg4[%c1_11, %c0_12, %c0_13, %c0_14] : memref<2x4x4x256xf32, #tpu.memory_space<vmem>>, vector<1x1x4x256xf32>
    %13 = vector.shape_cast %12 : vector<1x1x4x256xf32> to vector<4x256xf32>
    %14 = vector.shape_cast %13 : vector<4x256xf32> to vector<1x4x256xf32>
    %c0_15 = arith.constant 0 : index
    %c0_16 = arith.constant 0 : index
    %c0_17 = arith.constant 0 : index
    %c0_18 = arith.constant 0 : index
    %15 = vector.load %arg5[%c0_15, %c0_16, %c0_17, %c0_18] : memref<2x2x4x256xf32, #tpu.memory_space<vmem>>, vector<1x2x4x256xf32>
    %16 = vector.shape_cast %15 : vector<1x2x4x256xf32> to vector<2x4x256xf32>
    %17 = vector.broadcast %5 : vector<2x1x256xf32> to vector<2x4x256xf32>
    %18 = vector.broadcast %11 : vector<1x4x256xf32> to vector<2x4x256xf32>
    %19 = arith.mulf %17, %18 : vector<2x4x256xf32>
    %20 = vector.broadcast %8 : vector<2x1x256xf32> to vector<2x4x256xf32>
    %21 = vector.broadcast %14 : vector<1x4x256xf32> to vector<2x4x256xf32>
    %22 = arith.mulf %20, %21 : vector<2x4x256xf32>
    %23 = arith.subf %19, %22 : vector<2x4x256xf32>
    %24 = arith.addf %16, %23 : vector<2x4x256xf32>
    %c0_19 = arith.constant 0 : index
    %c0_20 = arith.constant 0 : index
    %c0_21 = arith.constant 0 : index
    %c0_22 = arith.constant 0 : index
    %25 = vector.load %arg5[%c0_19, %c0_20, %c0_21, %c0_22] : memref<2x2x4x256xf32, #tpu.memory_space<vmem>>, vector<1x2x4x256xf32>
    %26 = vector.shape_cast %25 : vector<1x2x4x256xf32> to vector<2x4x256xf32>
    %27 = vector.shape_cast %24 : vector<2x4x256xf32> to vector<1x2x4x256xf32>
    tpu.vector_store %arg5[%c0_19, %c0_20, %c0_21, %c0_22], %27 {strides = array<i32>} : memref<2x2x4x256xf32, #tpu.memory_space<vmem>>, vector<1x2x4x256xf32>,
    %c1_23 = arith.constant 1 : index
    %c0_24 = arith.constant 0 : index
    %c0_25 = arith.constant 0 : index
    %c0_26 = arith.constant 0 : index
    %28 = vector.load %arg5[%c1_23, %c0_24, %c0_25, %c0_26] : memref<2x2x4x256xf32, #tpu.memory_space<vmem>>, vector<1x2x4x256xf32>
    %29 = vector.shape_cast %28 : vector<1x2x4x256xf32> to vector<2x4x256xf32>
    %30 = vector.broadcast %5 : vector<2x1x256xf32> to vector<2x4x256xf32>
    %31 = vector.broadcast %14 : vector<1x4x256xf32> to vector<2x4x256xf32>
    %32 = arith.mulf %30, %31 : vector<2x4x256xf32>
    %33 = vector.broadcast %8 : vector<2x1x256xf32> to vector<2x4x256xf32>
    %34 = vector.broadcast %11 : vector<1x4x256xf32> to vector<2x4x256xf32>
    %35 = arith.mulf %33, %34 : vector<2x4x256xf32>
    %36 = arith.addf %32, %35 : vector<2x4x256xf32>
    %37 = arith.addf %29, %36 : vector<2x4x256xf32>
    %c1_27 = arith.constant 1 : index
    %c0_28 = arith.constant 0 : index
    %c0_29 = arith.constant 0 : index
    %c0_30 = arith.constant 0 : index
    %38 = vector.load %arg5[%c1_27, %c0_28, %c0_29, %c0_30] : memref<2x2x4x256xf32, #tpu.memory_space<vmem>>, vector<1x2x4x256xf32>
    %39 = vector.shape_cast %38 : vector<1x2x4x256xf32> to vector<2x4x256xf32>
    %40 = vector.shape_cast %37 : vector<2x4x256xf32> to vector<1x2x4x256xf32>
    tpu.vector_store %arg5[%c1_27, %c0_28, %c0_29, %c0_30], %40 {strides = array<i32>} : memref<2x2x4x256xf32, #tpu.memory_space<vmem>>, vector<1x2x4x256xf32>,
    %c0_31 = arith.constant 0 : index
    %c0_32 = arith.constant 0 : index
    %c1_33 = arith.constant 1 : index
    %c0_34 = arith.constant 0 : index
    %41 = vector.load %arg3[%c0_31, %c0_32, %c1_33, %c0_34] : memref<2x2x4x256xf32, #tpu.memory_space<vmem>>, vector<1x2x1x256xf32>
    %42 = vector.shape_cast %41 : vector<1x2x1x256xf32> to vector<2x256xf32>
    %43 = vector.shape_cast %42 : vector<2x256xf32> to vector<2x1x256xf32>
    %c1_35 = arith.constant 1 : index
    %c0_36 = arith.constant 0 : index
    %c1_37 = arith.constant 1 : index
    %c0_38 = arith.constant 0 : index
    %44 = vector.load %arg3[%c1_35, %c0_36, %c1_37, %c0_38] : memref<2x2x4x256xf32, #tpu.memory_space<vmem>>, vector<1x2x1x256xf32>
    %45 = vector.shape_cast %44 : vector<1x2x1x256xf32> to vector<2x256xf32>
    %46 = vector.shape_cast %45 : vector<2x256xf32> to vector<2x1x256xf32>
    %c0_39 = arith.constant 0 : index
    %c1_40 = arith.constant 1 : index
    %c0_41 = arith.constant 0 : index
    %c0_42 = arith.constant 0 : index
    %47 = vector.load %arg4[%c0_39, %c1_40, %c0_41, %c0_42] : memref<2x4x4x256xf32, #tpu.memory_space<vmem>>, vector<1x1x4x256xf32>
    %48 = vector.shape_cast %47 : vector<1x1x4x256xf32> to vector<4x256xf32>
    %49 = vector.shape_cast %48 : vector<4x256xf32> to vector<1x4x256xf32>
    %c1_43 = arith.constant 1 : index
    %c1_44 = arith.constant 1 : index
    %c0_45 = arith.constant 0 : index
    %c0_46 = arith.constant 0 : index
    %50 = vector.load %arg4[%c1_43, %c1_44, %c0_45, %c0_46] : memref<2x4x4x256xf32, #tpu.memory_space<vmem>>, vector<1x1x4x256xf32>
    %51 = vector.shape_cast %50 : vector<1x1x4x256xf32> to vector<4x256xf32>
    %52 = vector.shape_cast %51 : vector<4x256xf32> to vector<1x4x256xf32>
    %c0_47 = arith.constant 0 : index
    %c0_48 = arith.constant 0 : index
    %c0_49 = arith.constant 0 : index
    %c0_50 = arith.constant 0 : index
    %53 = vector.load %arg5[%c0_47, %c0_48, %c0_49, %c0_50] : memref<2x2x4x256xf32, #tpu.memory_space<vmem>>, vector<1x2x4x256xf32>
    %54 = vector.shape_cast %53 : vector<1x2x4x256xf32> to vector<2x4x256xf32>
    %55 = vector.broadcast %43 : vector<2x1x256xf32> to vector<2x4x256xf32>
    %56 = vector.broadcast %49 : vector<1x4x256xf32> to vector<2x4x256xf32>
    %57 = arith.mulf %55, %56 : vector<2x4x256xf32>
    %58 = vector.broadcast %46 : vector<2x1x256xf32> to vector<2x4x256xf32>
    %59 = vector.broadcast %52 : vector<1x4x256xf32> to vector<2x4x256xf32>
    %60 = arith.mulf %58, %59 : vector<2x4x256xf32>
    %61 = arith.subf %57, %60 : vector<2x4x256xf32>
    %62 = arith.addf %54, %61 : vector<2x4x256xf32>
    %c0_51 = arith.constant 0 : index
    %c0_52 = arith.constant 0 : index
    %c0_53 = arith.constant 0 : index
    %c0_54 = arith.constant 0 : index
    %63 = vector.load %arg5[%c0_51, %c0_52, %c0_53, %c0_54] : memref<2x2x4x256xf32, #tpu.memory_space<vmem>>, vector<1x2x4x256xf32>
    %64 = vector.shape_cast %63 : vector<1x2x4x256xf32> to vector<2x4x256xf32>
    %65 = vector.shape_cast %62 : vector<2x4x256xf32> to vector<1x2x4x256xf32>
    tpu.vector_store %arg5[%c0_51, %c0_52, %c0_53, %c0_54], %65 {strides = array<i32>} : memref<2x2x4x256xf32, #tpu.memory_space<vmem>>, vector<1x2x4x256xf32>,
    %c1_55 = arith.constant 1 : index
    %c0_56 = arith.constant 0 : index
    %c0_57 = arith.constant 0 : index
    %c0_58 = arith.constant 0 : index
    %66 = vector.load %arg5[%c1_55, %c0_56, %c0_57, %c0_58] : memref<2x2x4x256xf32, #tpu.memory_space<vmem>>, vector<1x2x4x256xf32>
    %67 = vector.shape_cast %66 : vector<1x2x4x256xf32> to vector<2x4x256xf32>
    %68 = vector.broadcast %43 : vector<2x1x256xf32> to vector<2x4x256xf32>
    %69 = vector.broadcast %52 : vector<1x4x256xf32> to vector<2x4x256xf32>
    %70 = arith.mulf %68, %69 : vector<2x4x256xf32>
    %71 = vector.broadcast %46 : vector<2x1x256xf32> to vector<2x4x256xf32>
    %72 = vector.broadcast %49 : vector<1x4x256xf32> to vector<2x4x256xf32>
    %73 = arith.mulf %71, %72 : vector<2x4x256xf32>
    %74 = arith.addf %70, %73 : vector<2x4x256xf32>
    %75 = arith.addf %67, %74 : vector<2x4x256xf32>
    %c1_59 = arith.constant 1 : index
    %c0_60 = arith.constant 0 : index
    %c0_61 = arith.constant 0 : index
    %c0_62 = arith.constant 0 : index
    %76 = vector.load %arg5[%c1_59, %c0_60, %c0_61, %c0_62] : memref<2x2x4x256xf32, #tpu.memory_space<vmem>>, vector<1x2x4x256xf32>
    %77 = vector.shape_cast %76 : vector<1x2x4x256xf32> to vector<2x4x256xf32>
    %78 = vector.shape_cast %75 : vector<2x4x256xf32> to vector<1x2x4x256xf32>
    tpu.vector_store %arg5[%c1_59, %c0_60, %c0_61, %c0_62], %78 {strides = array<i32>} : memref<2x2x4x256xf32, #tpu.memory_space<vmem>>, vector<1x2x4x256xf32>,
    %c0_63 = arith.constant 0 : index
    %c0_64 = arith.constant 0 : index
    %c2 = arith.constant 2 : index
    %c0_65 = arith.constant 0 : index
    %79 = vector.load %arg3[%c0_63, %c0_64, %c2, %c0_65] : memref<2x2x4x256xf32, #tpu.memory_space<vmem>>, vector<1x2x1x256xf32>
    %80 = vector.shape_cast %79 : vector<1x2x1x256xf32> to vector<2x256xf32>
    %81 = vector.shape_cast %80 : vector<2x256xf32> to vector<2x1x256xf32>
    %c1_66 = arith.constant 1 : index
    %c0_67 = arith.constant 0 : index
    %c2_68 = arith.constant 2 : index
    %c0_69 = arith.constant 0 : index
    %82 = vector.load %arg3[%c1_66, %c0_67, %c2_68, %c0_69] : memref<2x2x4x256xf32, #tpu.memory_space<vmem>>, vector<1x2x1x256xf32>
    %83 = vector.shape_cast %82 : vector<1x2x1x256xf32> to vector<2x256xf32>
    %84 = vector.shape_cast %83 : vector<2x256xf32> to vector<2x1x256xf32>
    %c0_70 = arith.constant 0 : index
    %c2_71 = arith.constant 2 : index
    %c0_72 = arith.constant 0 : index
    %c0_73 = arith.constant 0 : index
    %85 = vector.load %arg4[%c0_70, %c2_71, %c0_72, %c0_73] : memref<2x4x4x256xf32, #tpu.memory_space<vmem>>, vector<1x1x4x256xf32>
    %86 = vector.shape_cast %85 : vector<1x1x4x256xf32> to vector<4x256xf32>
    %87 = vector.shape_cast %86 : vector<4x256xf32> to vector<1x4x256xf32>
    %c1_74 = arith.constant 1 : index
    %c2_75 = arith.constant 2 : index
    %c0_76 = arith.constant 0 : index
    %c0_77 = arith.constant 0 : index
    %88 = vector.load %arg4[%c1_74, %c2_75, %c0_76, %c0_77] : memref<2x4x4x256xf32, #tpu.memory_space<vmem>>, vector<1x1x4x256xf32>
    %89 = vector.shape_cast %88 : vector<1x1x4x256xf32> to vector<4x256xf32>
    %90 = vector.shape_cast %89 : vector<4x256xf32> to vector<1x4x256xf32>
    %c0_78 = arith.constant 0 : index
    %c0_79 = arith.constant 0 : index
    %c0_80 = arith.constant 0 : index
    %c0_81 = arith.constant 0 : index
    %91 = vector.load %arg5[%c0_78, %c0_79, %c0_80, %c0_81] : memref<2x2x4x256xf32, #tpu.memory_space<vmem>>, vector<1x2x4x256xf32>
    %92 = vector.shape_cast %91 : vector<1x2x4x256xf32> to vector<2x4x256xf32>
    %93 = vector.broadcast %81 : vector<2x1x256xf32> to vector<2x4x256xf32>
    %94 = vector.broadcast %87 : vector<1x4x256xf32> to vector<2x4x256xf32>
    %95 = arith.mulf %93, %94 : vector<2x4x256xf32>
    %96 = vector.broadcast %84 : vector<2x1x256xf32> to vector<2x4x256xf32>
    %97 = vector.broadcast %90 : vector<1x4x256xf32> to vector<2x4x256xf32>
    %98 = arith.mulf %96, %97 : vector<2x4x256xf32>
    %99 = arith.subf %95, %98 : vector<2x4x256xf32>
    %100 = arith.addf %92, %99 : vector<2x4x256xf32>
    %c0_82 = arith.constant 0 : index
    %c0_83 = arith.constant 0 : index
    %c0_84 = arith.constant 0 : index
    %c0_85 = arith.constant 0 : index
    %101 = vector.load %arg5[%c0_82, %c0_83, %c0_84, %c0_85] : memref<2x2x4x256xf32, #tpu.memory_space<vmem>>, vector<1x2x4x256xf32>
    %102 = vector.shape_cast %101 : vector<1x2x4x256xf32> to vector<2x4x256xf32>
    %103 = vector.shape_cast %100 : vector<2x4x256xf32> to vector<1x2x4x256xf32>
    tpu.vector_store %arg5[%c0_82, %c0_83, %c0_84, %c0_85], %103 {strides = array<i32>} : memref<2x2x4x256xf32, #tpu.memory_space<vmem>>, vector<1x2x4x256xf32>,
    %c1_86 = arith.constant 1 : index
    %c0_87 = arith.constant 0 : index
    %c0_88 = arith.constant 0 : index
    %c0_89 = arith.constant 0 : index
    %104 = vector.load %arg5[%c1_86, %c0_87, %c0_88, %c0_89] : memref<2x2x4x256xf32, #tpu.memory_space<vmem>>, vector<1x2x4x256xf32>
    %105 = vector.shape_cast %104 : vector<1x2x4x256xf32> to vector<2x4x256xf32>
    %106 = vector.broadcast %81 : vector<2x1x256xf32> to vector<2x4x256xf32>
    %107 = vector.broadcast %90 : vector<1x4x256xf32> to vector<2x4x256xf32>
    %108 = arith.mulf %106, %107 : vector<2x4x256xf32>
    %109 = vector.broadcast %84 : vector<2x1x256xf32> to vector<2x4x256xf32>
    %110 = vector.broadcast %87 : vector<1x4x256xf32> to vector<2x4x256xf32>
    %111 = arith.mulf %109, %110 : vector<2x4x256xf32>
    %112 = arith.addf %108, %111 : vector<2x4x256xf32>
    %113 = arith.addf %105, %112 : vector<2x4x256xf32>
    %c1_90 = arith.constant 1 : index
    %c0_91 = arith.constant 0 : index
    %c0_92 = arith.constant 0 : index
    %c0_93 = arith.constant 0 : index
    %114 = vector.load %arg5[%c1_90, %c0_91, %c0_92, %c0_93] : memref<2x2x4x256xf32, #tpu.memory_space<vmem>>, vector<1x2x4x256xf32>
    %115 = vector.shape_cast %114 : vector<1x2x4x256xf32> to vector<2x4x256xf32>
    %116 = vector.shape_cast %113 : vector<2x4x256xf32> to vector<1x2x4x256xf32>
    tpu.vector_store %arg5[%c1_90, %c0_91, %c0_92, %c0_93], %116 {strides = array<i32>} : memref<2x2x4x256xf32, #tpu.memory_space<vmem>>, vector<1x2x4x256xf32>,
    %c0_94 = arith.constant 0 : index
    %c0_95 = arith.constant 0 : index
    %c3 = arith.constant 3 : index
    %c0_96 = arith.constant 0 : index
    %117 = vector.load %arg3[%c0_94, %c0_95, %c3, %c0_96] : memref<2x2x4x256xf32, #tpu.memory_space<vmem>>, vector<1x2x1x256xf32>
    %118 = vector.shape_cast %117 : vector<1x2x1x256xf32> to vector<2x256xf32>
    %119 = vector.shape_cast %118 : vector<2x256xf32> to vector<2x1x256xf32>
    %c1_97 = arith.constant 1 : index
    %c0_98 = arith.constant 0 : index
    %c3_99 = arith.constant 3 : index
    %c0_100 = arith.constant 0 : index
    %120 = vector.load %arg3[%c1_97, %c0_98, %c3_99, %c0_100] : memref<2x2x4x256xf32, #tpu.memory_space<vmem>>, vector<1x2x1x256xf32>
    %121 = vector.shape_cast %120 : vector<1x2x1x256xf32> to vector<2x256xf32>
    %122 = vector.shape_cast %121 : vector<2x256xf32> to vector<2x1x256xf32>
    %c0_101 = arith.constant 0 : index
    %c3_102 = arith.constant 3 : index
    %c0_103 = arith.constant 0 : index
    %c0_104 = arith.constant 0 : index
    %123 = vector.load %arg4[%c0_101, %c3_102, %c0_103, %c0_104] : memref<2x4x4x256xf32, #tpu.memory_space<vmem>>, vector<1x1x4x256xf32>
    %124 = vector.shape_cast %123 : vector<1x1x4x256xf32> to vector<4x256xf32>
    %125 = vector.shape_cast %124 : vector<4x256xf32> to vector<1x4x256xf32>
    %c1_105 = arith.constant 1 : index
    %c3_106 = arith.constant 3 : index
    %c0_107 = arith.constant 0 : index
    %c0_108 = arith.constant 0 : index
    %126 = vector.load %arg4[%c1_105, %c3_106, %c0_107, %c0_108] : memref<2x4x4x256xf32, #tpu.memory_space<vmem>>, vector<1x1x4x256xf32>
    %127 = vector.shape_cast %126 : vector<1x1x4x256xf32> to vector<4x256xf32>
    %128 = vector.shape_cast %127 : vector<4x256xf32> to vector<1x4x256xf32>
    %c0_109 = arith.constant 0 : index
    %c0_110 = arith.constant 0 : index
    %c0_111 = arith.constant 0 : index
    %c0_112 = arith.constant 0 : index
    %129 = vector.load %arg5[%c0_109, %c0_110, %c0_111, %c0_112] : memref<2x2x4x256xf32, #tpu.memory_space<vmem>>, vector<1x2x4x256xf32>
    %130 = vector.shape_cast %129 : vector<1x2x4x256xf32> to vector<2x4x256xf32>
    %131 = vector.broadcast %119 : vector<2x1x256xf32> to vector<2x4x256xf32>
    %132 = vector.broadcast %125 : vector<1x4x256xf32> to vector<2x4x256xf32>
    %133 = arith.mulf %131, %132 : vector<2x4x256xf32>
    %134 = vector.broadcast %122 : vector<2x1x256xf32> to vector<2x4x256xf32>
    %135 = vector.broadcast %128 : vector<1x4x256xf32> to vector<2x4x256xf32>
    %136 = arith.mulf %134, %135 : vector<2x4x256xf32>
    %137 = arith.subf %133, %136 : vector<2x4x256xf32>
    %138 = arith.addf %130, %137 : vector<2x4x256xf32>
    %c0_113 = arith.constant 0 : index
    %c0_114 = arith.constant 0 : index
    %c0_115 = arith.constant 0 : index
    %c0_116 = arith.constant 0 : index
    %139 = vector.load %arg5[%c0_113, %c0_114, %c0_115, %c0_116] : memref<2x2x4x256xf32, #tpu.memory_space<vmem>>, vector<1x2x4x256xf32>
    %140 = vector.shape_cast %139 : vector<1x2x4x256xf32> to vector<2x4x256xf32>
    %141 = vector.shape_cast %138 : vector<2x4x256xf32> to vector<1x2x4x256xf32>
    tpu.vector_store %arg5[%c0_113, %c0_114, %c0_115, %c0_116], %141 {strides = array<i32>} : memref<2x2x4x256xf32, #tpu.memory_space<vmem>>, vector<1x2x4x256xf32>,
    %c1_117 = arith.constant 1 : index
    %c0_118 = arith.constant 0 : index
    %c0_119 = arith.constant 0 : index
    %c0_120 = arith.constant 0 : index
    %142 = vector.load %arg5[%c1_117, %c0_118, %c0_119, %c0_120] : memref<2x2x4x256xf32, #tpu.memory_space<vmem>>, vector<1x2x4x256xf32>
    %143 = vector.shape_cast %142 : vector<1x2x4x256xf32> to vector<2x4x256xf32>
    %144 = vector.broadcast %119 : vector<2x1x256xf32> to vector<2x4x256xf32>
    %145 = vector.broadcast %128 : vector<1x4x256xf32> to vector<2x4x256xf32>
    %146 = arith.mulf %144, %145 : vector<2x4x256xf32>
    %147 = vector.broadcast %122 : vector<2x1x256xf32> to vector<2x4x256xf32>
    %148 = vector.broadcast %125 : vector<1x4x256xf32> to vector<2x4x256xf32>
    %149 = arith.mulf %147, %148 : vector<2x4x256xf32>
    %150 = arith.addf %146, %149 : vector<2x4x256xf32>
    %151 = arith.addf %143, %150 : vector<2x4x256xf32>
    %c1_121 = arith.constant 1 : index
    %c0_122 = arith.constant 0 : index
    %c0_123 = arith.constant 0 : index
    %c0_124 = arith.constant 0 : index
    %152 = vector.load %arg5[%c1_121, %c0_122, %c0_123, %c0_124] : memref<2x2x4x256xf32, #tpu.memory_space<vmem>>, vector<1x2x4x256xf32>
    %153 = vector.shape_cast %152 : vector<1x2x4x256xf32> to vector<2x4x256xf32>
    %154 = vector.shape_cast %151 : vector<2x4x256xf32> to vector<1x2x4x256xf32>
    tpu.vector_store %arg5[%c1_121, %c0_122, %c0_123, %c0_124], %154 {strides = array<i32>} : memref<2x2x4x256xf32, #tpu.memory_space<vmem>>, vector<1x2x4x256xf32>,
    return
  }
  func.func @transform_0(%arg0: i32, %arg1: i32, %arg2: i32) -> (i32, i32, i32, i32) {
    %c0_i32 = arith.constant 0 : i32
    %c0_i32_0 = arith.constant 0 : i32
    %c0_i32_1 = arith.constant 0 : i32
    return %c0_i32, %c0_i32_0, %arg2, %arg1 : i32, i32, i32, i32
  }
  func.func @transform_1(%arg0: i32, %arg1: i32, %arg2: i32) -> (i32, i32, i32, i32) {
    %c0_i32 = arith.constant 0 : i32
    %c0_i32_0 = arith.constant 0 : i32
    return %c0_i32, %arg2, %arg0, %arg1 : i32, i32, i32, i32
  }
  func.func @transform_2(%arg0: i32, %arg1: i32, %arg2: i32) -> (i32, i32, i32, i32) {
    %c0_i32 = arith.constant 0 : i32
    %c0_i32_0 = arith.constant 0 : i32
    %c0_i32_1 = arith.constant 0 : i32
    return %c0_i32, %c0_i32_0, %arg0, %arg1 : i32, i32, i32, i32
  }
}

</mosaic_0001>

<llo_original>
// kernel: a_call__.1
$region0: #{a_call__.1}
  #allocation0 [shape = 'u32[]', space=smem, size = 0x4, offset = 0x4, fixed_abs, tag = 'smem constant byte address 0x4 - core index']
  #allocation1 [shape = 'u32[144,128]{1,0:T(1,128)}', space=vmem, size = 0x12000, scoped, tag = 'internal scratch']
  %s0 = inlined_call_operand.vmem [shape: f32[2,2,4,256], index: 0, kind: input, shape index: {}]
  %s1 = inlined_call_operand.vmem [shape: f32[2,4,4,256], index: 1, kind: input, shape index: {}]
  %s2 = inlined_call_operand.vmem [shape: f32[2,2,4,256], index: 2, kind: output, shape index: {}]
  %s3 = sld [smem:[#allocation0]]
  $region22: #{a_call__.1} parent=0
    _
  %s5 = ssub.s32 1, %s3
  %s6 = scalar_select 0, %s5, %s3
  // Predicated region
  $region2: #{a_call__.1} parent=0 // pred_check
    _
  $region3: #{a_call__.1} parent=0 // pred_check_branch
    %8 = sbr.rel (0) target = $region5
  $region4: #{a_call__.1} parent=0 // pred_region
    _
  $region5: #{a_call__.1} parent=0 // pred_fallthru
    _
  // Predicated region
  $region6: #{a_call__.1} parent=0 // pred_check
    _
  $region7: #{a_call__.1} parent=0 // pred_check_branch
    %10 = sbr.rel (0) target = $region9
  $region8: #{a_call__.1} parent=0 // pred_region
    _
  $region9: #{a_call__.1} parent=0 // pred_fallthru
    _
  %p11 = scmp.eq.s32.totalorder 0, 0
  // Predicated region
  $region10: #{a_call__.1} parent=0 // pred_check
    %p12 = pneg %p11
  $region11: #{a_call__.1} parent=0 // pred_check_branch
    %14 = sbr.rel (%p12) target = $region13
  $region12: #{a_call__.1} parent=0 // pred_region
    %15 = vst [vmem:[%s2] sm:$0xff] 0.0
    %16 = vst [vmem:[%s2 + $0x8] sm:$0xff] 0.0
    %17 = vst [vmem:[%s2 + $0x10] sm:$0xff] 0.0
    %18 = vst [vmem:[%s2 + $0x18] sm:$0xff] 0.0
  $region13: #{a_call__.1} parent=0 // pred_fallthru
    _
  %v19 = vld [vmem:[%s0] ss:$4 sm:$0x3]
  %s20 = scalar_lea.vmem %s0, 8
  %v21 = vld [vmem:[%s20] ss:$4 sm:$0x3]
  %s22 = scalar_lea.vmem %s0, 16
  %v23 = vld [vmem:[%s22] ss:$4 sm:$0x3]
  %s24 = scalar_lea.vmem %s22, 8
  %v25 = vld [vmem:[%s24] ss:$4 sm:$0x3]
  %v26 = vld [vmem:[%s1] sm:$0xff]
  %s27 = scalar_lea.vmem %s1, 32
  %v28 = vld [vmem:[%s27] sm:$0xff]
  %v29 = vld [vmem:[%s2] sm:$0xff]
  %v30 = vld [vmem:[%s2 + $0x8] sm:$0xff]
  %v33 = vlaneseq
  %v34 = vshrl.u32 %v33, 7
  %v35 = vsub.s32 0, %v34
  %v36 = vrot.slane %v19, %v35
  %v37 = vlaneseq
  %v38 = vshrl.u32 %v37, 7
  %v39 = vsub.s32 1, %v38
  %v40 = vrot.slane %v19, %v39
  %v41 = vlaneseq
  %v42 = vshrl.u32 %v41, 7
  %v43 = vsub.s32 0, %v42
  %v44 = vrot.slane %v21, %v43
  %v45 = vlaneseq
  %v46 = vshrl.u32 %v45, 7
  %v47 = vsub.s32 1, %v46
  %v48 = vrot.slane %v21, %v47
  %v54 = vcombine.high %v26, %v26
  %v56 = vmul.f32 %v36, %v26
  %v57 = vmul.f32 %v40, %v54
  %v58 = vmul.f32 %v44, %v26
  %v59 = vmul.f32 %v48, %v54
  %v62 = vlaneseq
  %v63 = vshrl.u32 %v62, 7
  %v64 = vsub.s32 0, %v63
  %v65 = vrot.slane %v23, %v64
  %v66 = vlaneseq
  %v67 = vshrl.u32 %v66, 7
  %v68 = vsub.s32 1, %v67
  %v69 = vrot.slane %v23, %v68
  %v70 = vlaneseq
  %v71 = vshrl.u32 %v70, 7
  %v72 = vsub.s32 0, %v71
  %v73 = vrot.slane %v25, %v72
  %v74 = vlaneseq
  %v75 = vshrl.u32 %v74, 7
  %v76 = vsub.s32 1, %v75
  %v77 = vrot.slane %v25, %v76
  %v83 = vcombine.high %v28, %v28
  %v85 = vmul.f32 %v65, %v28
  %v86 = vmul.f32 %v69, %v83
  %v87 = vmul.f32 %v73, %v28
  %v88 = vmul.f32 %v77, %v83
  %v89 = vsub.f32 %v56, %v85
  %v90 = vsub.f32 %v57, %v86
  %v91 = vsub.f32 %v58, %v87
  %v92 = vsub.f32 %v59, %v88
  %v97 = vcombine.low %v89, %v90
  %v98 = vcombine.low %v91, %v92
  %v101 = vadd.f32 %v29, %v97
  %v102 = vadd.f32 %v30, %v98
  %103 = vst [vmem:[%s2] sm:$0xff] %v101
  %104 = vst [vmem:[%s2 + $0x8] sm:$0xff] %v102
  %s105 = scalar_lea.vmem %s2, 16
  %v106 = vld [vmem:[%s105] sm:$0xff]
  %v107 = vld [vmem:[%s105 + $0x8] sm:$0xff]
  %v108 = vmul.f32 %v36, %v28
  %v109 = vmul.f32 %v40, %v83
  %v110 = vmul.f32 %v44, %v28
  %v111 = vmul.f32 %v48, %v83
  %v112 = vmul.f32 %v65, %v26
  %v113 = vmul.f32 %v69, %v54
  %v114 = vmul.f32 %v73, %v26
  %v115 = vmul.f32 %v77, %v54
  %v116 = vadd.f32 %v108, %v112
  %v117 = vadd.f32 %v109, %v113
  %v118 = vadd.f32 %v110, %v114
  %v119 = vadd.f32 %v111, %v115
  %v124 = vcombine.low %v116, %v117
  %v125 = vcombine.low %v118, %v119
  %v128 = vadd.f32 %v106, %v124
  %v129 = vadd.f32 %v107, %v125
  %130 = vst [vmem:[%s105] sm:$0xff] %v128
  %131 = vst [vmem:[%s105 + $0x8] sm:$0xff] %v129
  %s132 = scalar_lea.vmem %s0, 1
  %v133 = vld [vmem:[%s132] ss:$4 sm:$0x3]
  %s134 = scalar_lea.vmem %s0, 9
  %v135 = vld [vmem:[%s134] ss:$4 sm:$0x3]
  %s136 = scalar_lea.vmem %s22, 1
  %v137 = vld [vmem:[%s136] ss:$4 sm:$0x3]
  %s138 = scalar_lea.vmem %s22, 9
  %v139 = vld [vmem:[%s138] ss:$4 sm:$0x3]
  %s140 = scalar_lea.vmem %s1, 8
  %v141 = vld [vmem:[%s140] sm:$0xff]
  %s142 = scalar_lea.vmem %s1, 40
  %v143 = vld [vmem:[%s142] sm:$0xff]
  %v144 = vld [vmem:[%s2] sm:$0xff]
  %v145 = vld [vmem:[%s2 + $0x8] sm:$0xff]
  %v148 = vlaneseq
  %v149 = vshrl.u32 %v148, 7
  %v150 = vsub.s32 0, %v149
  %v151 = vrot.slane %v133, %v150
  %v152 = vlaneseq
  %v153 = vshrl.u32 %v152, 7
  %v154 = vsub.s32 1, %v153
  %v155 = vrot.slane %v133, %v154
  %v156 = vlaneseq
  %v157 = vshrl.u32 %v156, 7
  %v158 = vsub.s32 0, %v157
  %v159 = vrot.slane %v135, %v158
  %v160 = vlaneseq
  %v161 = vshrl.u32 %v160, 7
  %v162 = vsub.s32 1, %v161
  %v163 = vrot.slane %v135, %v162
  %v169 = vcombine.high %v141, %v141
  %v171 = vmul.f32 %v151, %v141
  %v172 = vmul.f32 %v155, %v169
  %v173 = vmul.f32 %v159, %v141
  %v174 = vmul.f32 %v163, %v169
  %v177 = vlaneseq
  %v178 = vshrl.u32 %v177, 7
  %v179 = vsub.s32 0, %v178
  %v180 = vrot.slane %v137, %v179
  %v181 = vlaneseq
  %v182 = vshrl.u32 %v181, 7
  %v183 = vsub.s32 1, %v182
  %v184 = vrot.slane %v137, %v183
  %v185 = vlaneseq
  %v186 = vshrl.u32 %v185, 7
  %v187 = vsub.s32 0, %v186
  %v188 = vrot.slane %v139, %v187
  %v189 = vlaneseq
  %v190 = vshrl.u32 %v189, 7
  %v191 = vsub.s32 1, %v190
  %v192 = vrot.slane %v139, %v191
  %v198 = vcombine.high %v143, %v143
  %v200 = vmul.f32 %v180, %v143
  %v201 = vmul.f32 %v184, %v198
  %v202 = vmul.f32 %v188, %v143
  %v203 = vmul.f32 %v192, %v198
  %v204 = vsub.f32 %v171, %v200
  %v205 = vsub.f32 %v172, %v201
  %v206 = vsub.f32 %v173, %v202
  %v207 = vsub.f32 %v174, %v203
  %v212 = vcombine.low %v204, %v205
  %v213 = vcombine.low %v206, %v207
  %v216 = vadd.f32 %v144, %v212
  %v217 = vadd.f32 %v145, %v213
  %218 = vst [vmem:[%s2] sm:$0xff] %v216
  %219 = vst [vmem:[%s2 + $0x8] sm:$0xff] %v217
  %v220 = vld [vmem:[%s105] sm:$0xff]
  %v221 = vld [vmem:[%s105 + $0x8] sm:$0xff]
  %v222 = vmul.f32 %v151, %v143
  %v223 = vmul.f32 %v155, %v198
  %v224 = vmul.f32 %v159, %v143
  %v225 = vmul.f32 %v163, %v198
  %v226 = vmul.f32 %v180, %v141
  %v227 = vmul.f32 %v184, %v169
  %v228 = vmul.f32 %v188, %v141
  %v229 = vmul.f32 %v192, %v169
  %v230 = vadd.f32 %v222, %v226
  %v231 = vadd.f32 %v223, %v227
  %v232 = vadd.f32 %v224, %v228
  %v233 = vadd.f32 %v225, %v229
  %v238 = vcombine.low %v230, %v231
  %v239 = vcombine.low %v232, %v233
  %v242 = vadd.f32 %v220, %v238
  %v243 = vadd.f32 %v221, %v239
  %244 = vst [vmem:[%s105] sm:$0xff] %v242
  %245 = vst [vmem:[%s105 + $0x8] sm:$0xff] %v243
  %s246 = scalar_lea.vmem %s0, 2
  %v247 = vld [vmem:[%s246] ss:$4 sm:$0x3]
  %s248 = scalar_lea.vmem %s0, 10
  %v249 = vld [vmem:[%s248] ss:$4 sm:$0x3]
  %s250 = scalar_lea.vmem %s22, 2
  %v251 = vld [vmem:[%s250] ss:$4 sm:$0x3]
  %s252 = scalar_lea.vmem %s22, 10
  %v253 = vld [vmem:[%s252] ss:$4 sm:$0x3]
  %s254 = scalar_lea.vmem %s1, 16
  %v255 = vld [vmem:[%s254] sm:$0xff]
  %s256 = scalar_lea.vmem %s1, 48
  %v257 = vld [vmem:[%s256] sm:$0xff]
  %v258 = vld [vmem:[%s2] sm:$0xff]
  %v259 = vld [vmem:[%s2 + $0x8] sm:$0xff]
  %v262 = vlaneseq
  %v263 = vshrl.u32 %v262, 7
  %v264 = vsub.s32 0, %v263
  %v265 = vrot.slane %v247, %v264
  %v266 = vlaneseq
  %v267 = vshrl.u32 %v266, 7
  %v268 = vsub.s32 1, %v267
  %v269 = vrot.slane %v247, %v268
  %v270 = vlaneseq
  %v271 = vshrl.u32 %v270, 7
  %v272 = vsub.s32 0, %v271
  %v273 = vrot.slane %v249, %v272
  %v274 = vlaneseq
  %v275 = vshrl.u32 %v274, 7
  %v276 = vsub.s32 1, %v275
  %v277 = vrot.slane %v249, %v276
  %v283 = vcombine.high %v255, %v255
  %v285 = vmul.f32 %v265, %v255
  %v286 = vmul.f32 %v269, %v283
  %v287 = vmul.f32 %v273, %v255
  %v288 = vmul.f32 %v277, %v283
  %v291 = vlaneseq
  %v292 = vshrl.u32 %v291, 7
  %v293 = vsub.s32 0, %v292
  %v294 = vrot.slane %v251, %v293
  %v295 = vlaneseq
  %v296 = vshrl.u32 %v295, 7
  %v297 = vsub.s32 1, %v296
  %v298 = vrot.slane %v251, %v297
  %v299 = vlaneseq
  %v300 = vshrl.u32 %v299, 7
  %v301 = vsub.s32 0, %v300
  %v302 = vrot.slane %v253, %v301
  %v303 = vlaneseq
  %v304 = vshrl.u32 %v303, 7
  %v305 = vsub.s32 1, %v304
  %v306 = vrot.slane %v253, %v305
  %v312 = vcombine.high %v257, %v257
  %v314 = vmul.f32 %v294, %v257
  %v315 = vmul.f32 %v298, %v312
  %v316 = vmul.f32 %v302, %v257
  %v317 = vmul.f32 %v306, %v312
  %v318 = vsub.f32 %v285, %v314
  %v319 = vsub.f32 %v286, %v315
  %v320 = vsub.f32 %v287, %v316
  %v321 = vsub.f32 %v288, %v317
  %v326 = vcombine.low %v318, %v319
  %v327 = vcombine.low %v320, %v321
  %v330 = vadd.f32 %v258, %v326
  %v331 = vadd.f32 %v259, %v327
  %332 = vst [vmem:[%s2] sm:$0xff] %v330
  %333 = vst [vmem:[%s2 + $0x8] sm:$0xff] %v331
  %v334 = vld [vmem:[%s105] sm:$0xff]
  %v335 = vld [vmem:[%s105 + $0x8] sm:$0xff]
  %v336 = vmul.f32 %v265, %v257
  %v337 = vmul.f32 %v269, %v312
  %v338 = vmul.f32 %v273, %v257
  %v339 = vmul.f32 %v277, %v312
  %v340 = vmul.f32 %v294, %v255
  %v341 = vmul.f32 %v298, %v283
  %v342 = vmul.f32 %v302, %v255
  %v343 = vmul.f32 %v306, %v283
  %v344 = vadd.f32 %v336, %v340
  %v345 = vadd.f32 %v337, %v341
  %v346 = vadd.f32 %v338, %v342
  %v347 = vadd.f32 %v339, %v343
  %v352 = vcombine.low %v344, %v345
  %v353 = vcombine.low %v346, %v347
  %v356 = vadd.f32 %v334, %v352
  %v357 = vadd.f32 %v335, %v353
  %358 = vst [vmem:[%s105] sm:$0xff] %v356
  %359 = vst [vmem:[%s105 + $0x8] sm:$0xff] %v357
  %s360 = scalar_lea.vmem %s0, 3
  %v361 = vld [vmem:[%s360] ss:$4 sm:$0x3]
  %s362 = scalar_lea.vmem %s0, 11
  %v363 = vld [vmem:[%s362] ss:$4 sm:$0x3]
  %s364 = scalar_lea.vmem %s22, 3
  %v365 = vld [vmem:[%s364] ss:$4 sm:$0x3]
  %s366 = scalar_lea.vmem %s22, 11
  %v367 = vld [vmem:[%s366] ss:$4 sm:$0x3]
  %s368 = scalar_lea.vmem %s1, 24
  %v369 = vld [vmem:[%s368] sm:$0xff]
  %s370 = scalar_lea.vmem %s1, 56
  %v371 = vld [vmem:[%s370] sm:$0xff]
  %v372 = vld [vmem:[%s2] sm:$0xff]
  %v373 = vld [vmem:[%s2 + $0x8] sm:$0xff]
  %v376 = vlaneseq
  %v377 = vshrl.u32 %v376, 7
  %v378 = vsub.s32 0, %v377
  %v379 = vrot.slane %v361, %v378
  %v380 = vlaneseq
  %v381 = vshrl.u32 %v380, 7
  %v382 = vsub.s32 1, %v381
  %v383 = vrot.slane %v361, %v382
  %v384 = vlaneseq
  %v385 = vshrl.u32 %v384, 7
  %v386 = vsub.s32 0, %v385
  %v387 = vrot.slane %v363, %v386
  %v388 = vlaneseq
  %v389 = vshrl.u32 %v388, 7
  %v390 = vsub.s32 1, %v389
  %v391 = vrot.slane %v363, %v390
  %v397 = vcombine.high %v369, %v369
  %v399 = vmul.f32 %v379, %v369
  %v400 = vmul.f32 %v383, %v397
  %v401 = vmul.f32 %v387, %v369
  %v402 = vmul.f32 %v391, %v397
  %v405 = vlaneseq
  %v406 = vshrl.u32 %v405, 7
  %v407 = vsub.s32 0, %v406
  %v408 = vrot.slane %v365, %v407
  %v409 = vlaneseq
  %v410 = vshrl.u32 %v409, 7
  %v411 = vsub.s32 1, %v410
  %v412 = vrot.slane %v365, %v411
  %v413 = vlaneseq
  %v414 = vshrl.u32 %v413, 7
  %v415 = vsub.s32 0, %v414
  %v416 = vrot.slane %v367, %v415
  %v417 = vlaneseq
  %v418 = vshrl.u32 %v417, 7
  %v419 = vsub.s32 1, %v418
  %v420 = vrot.slane %v367, %v419
  %v426 = vcombine.high %v371, %v371
  %v428 = vmul.f32 %v408, %v371
  %v429 = vmul.f32 %v412, %v426
  %v430 = vmul.f32 %v416, %v371
  %v431 = vmul.f32 %v420, %v426
  %v432 = vsub.f32 %v399, %v428
  %v433 = vsub.f32 %v400, %v429
  %v434 = vsub.f32 %v401, %v430
  %v435 = vsub.f32 %v402, %v431
  %v440 = vcombine.low %v432, %v433
  %v441 = vcombine.low %v434, %v435
  %v444 = vadd.f32 %v372, %v440
  %v445 = vadd.f32 %v373, %v441
  %446 = vst [vmem:[%s2] sm:$0xff] %v444
  %447 = vst [vmem:[%s2 + $0x8] sm:$0xff] %v445
  %v448 = vld [vmem:[%s105] sm:$0xff]
  %v449 = vld [vmem:[%s105 + $0x8] sm:$0xff]
  %v450 = vmul.f32 %v379, %v371
  %v451 = vmul.f32 %v383, %v426
  %v452 = vmul.f32 %v387, %v371
  %v453 = vmul.f32 %v391, %v426
  %v454 = vmul.f32 %v408, %v369
  %v455 = vmul.f32 %v412, %v397
  %v456 = vmul.f32 %v416, %v369
  %v457 = vmul.f32 %v420, %v397
  %v458 = vadd.f32 %v450, %v454
  %v459 = vadd.f32 %v451, %v455
  %v460 = vadd.f32 %v452, %v456
  %v461 = vadd.f32 %v453, %v457
  %v466 = vcombine.low %v458, %v459
  %v467 = vcombine.low %v460, %v461
  %v470 = vadd.f32 %v448, %v466
  %v471 = vadd.f32 %v449, %v467
  %472 = vst [vmem:[%s105] sm:$0xff] %v470
  %473 = vst [vmem:[%s105 + $0x8] sm:$0xff] %v471
  // Predicated region
  $region14: #{a_call__.1} parent=0 // pred_check
    _
  $region15: #{a_call__.1} parent=0 // pred_check_branch
    %475 = sbr.rel (0) target = $region17
  $region16: #{a_call__.1} parent=0 // pred_region
    _
  $region17: #{a_call__.1} parent=0 // pred_fallthru
    _
  // Predicated region
  $region18: #{a_call__.1} parent=0 // pred_check
    _
  $region19: #{a_call__.1} parent=0 // pred_check_branch
    %477 = sbr.rel (0) target = $region21
  $region20: #{a_call__.1} parent=0 // pred_region
    _
  $region21: #{a_call__.1} parent=0 // pred_fallthru
    _

// kernel: reverse.1
$region0: #{reverse.1}
  #allocation0 [shape = 's32[1]{0}', space=sflag, size = 0x4, scoped, tag = 'scoped memory for reverse.1']
  %s0 = inlined_call_operand.vmem [shape: f32[2,4,16,16,7], index: 0, kind: input, shape index: {}]
  %s1 = inlined_call_operand.vmem [shape: f32[2,4,16,16,7], index: 1, kind: output, shape index: {}]
  %s2 = scalar_lea.vmem %s0, 96
  %v3 = vld [vmem:[%s2] sm:$0xff]
  %4 = vst [vmem:[%s1] sm:$0xff] %v3
  %s5 = scalar_lea.vmem %s0, 544
  %v6 = vld [vmem:[%s5] sm:$0xff]
  %s7 = scalar_lea.vmem %s1, 448
  %8 = vst [vmem:[%s7] sm:$0xff] %v6
  %s9 = scalar_lea.vmem %s0, 208
  %v10 = vld [vmem:[%s9] sm:$0xff]
  %s11 = scalar_lea.vmem %s1, 112
  %12 = vst [vmem:[%s11] sm:$0xff] %v10
  %s13 = scalar_lea.vmem %s0, 656
  %v14 = vld [vmem:[%s13] sm:$0xff]
  %s15 = scalar_lea.vmem %s1, 560
  %16 = vst [vmem:[%s15] sm:$0xff] %v14
  %s17 = scalar_lea.vmem %s0, 320
  %v18 = vld [vmem:[%s17] sm:$0xff]
  %s19 = scalar_lea.vmem %s1, 224
  %20 = vst [vmem:[%s19] sm:$0xff] %v18
  %s21 = scalar_lea.vmem %s0, 768
  %v22 = vld [vmem:[%s21] sm:$0xff]
  %s23 = scalar_lea.vmem %s1, 672
  %24 = vst [vmem:[%s23] sm:$0xff] %v22
  %s25 = scalar_lea.vmem %s0, 432
  %v26 = vld [vmem:[%s25] sm:$0xff]
  %s27 = scalar_lea.vmem %s1, 336
  %28 = vst [vmem:[%s27] sm:$0xff] %v26
  %s29 = scalar_lea.vmem %s0, 880
  %v30 = vld [vmem:[%s29] sm:$0xff]
  %s31 = scalar_lea.vmem %s1, 784
  %32 = vst [vmem:[%s31] sm:$0xff] %v30
  %s33 = scalar_lea.vmem %s0, 80
  %v34 = vld [vmem:[%s33] sm:$0xff]
  %s35 = scalar_lea.vmem %s1, 16
  %36 = vst [vmem:[%s35] sm:$0xff] %v34
  %s37 = scalar_lea.vmem %s0, 528
  %v38 = vld [vmem:[%s37] sm:$0xff]
  %s39 = scalar_lea.vmem %s1, 464
  %40 = vst [vmem:[%s39] sm:$0xff] %v38
  %s41 = scalar_lea.vmem %s0, 192
  %v42 = vld [vmem:[%s41] sm:$0xff]
  %s43 = scalar_lea.vmem %s1, 128
  %44 = vst [vmem:[%s43] sm:$0xff] %v42
  %s45 = scalar_lea.vmem %s0, 640
  %v46 = vld [vmem:[%s45] sm:$0xff]
  %s47 = scalar_lea.vmem %s1, 576
  %48 = vst [vmem:[%s47] sm:$0xff] %v46
  %s49 = scalar_lea.vmem %s0, 304
  %v50 = vld [vmem:[%s49] sm:$0xff]
  %s51 = scalar_lea.vmem %s1, 240
  %52 = vst [vmem:[%s51] sm:$0xff] %v50
  %s53 = scalar_lea.vmem %s0, 752
  %v54 = vld [vmem:[%s53] sm:$0xff]
  %s55 = scalar_lea.vmem %s1, 688
  %56 = vst [vmem:[%s55] sm:$0xff] %v54
  %s57 = scalar_lea.vmem %s0, 416
  %v58 = vld [vmem:[%s57] sm:$0xff]
  %s59 = scalar_lea.vmem %s1, 352
  %60 = vst [vmem:[%s59] sm:$0xff] %v58
  %s61 = scalar_lea.vmem %s0, 864
  %v62 = vld [vmem:[%s61] sm:$0xff]
  %s63 = scalar_lea.vmem %s1, 800
  %64 = vst [vmem:[%s63] sm:$0xff] %v62
  %s65 = scalar_lea.vmem %s0, 64
  %v66 = vld [vmem:[%s65] sm:$0xff]
  %s67 = scalar_lea.vmem %s1, 32
  %68 = vst [vmem:[%s67] sm:$0xff] %v66
  %s69 = scalar_lea.vmem %s0, 512
  %v70 = vld [vmem:[%s69] sm:$0xff]
  %s71 = scalar_lea.vmem %s1, 480
  %72 = vst [vmem:[%s71] sm:$0xff] %v70
  %s73 = scalar_lea.vmem %s0, 176
  %v74 = vld [vmem:[%s73] sm:$0xff]
  %s75 = scalar_lea.vmem %s1, 144
  %76 = vst [vmem:[%s75] sm:$0xff] %v74
  %s77 = scalar_lea.vmem %s0, 624
  %v78 = vld [vmem:[%s77] sm:$0xff]
  %s79 = scalar_lea.vmem %s1, 592
  %80 = vst [vmem:[%s79] sm:$0xff] %v78
  %s81 = scalar_lea.vmem %s0, 288
  %v82 = vld [vmem:[%s81] sm:$0xff]
  %s83 = scalar_lea.vmem %s1, 256
  %84 = vst [vmem:[%s83] sm:$0xff] %v82
  %s85 = scalar_lea.vmem %s0, 736
  %v86 = vld [vmem:[%s85] sm:$0xff]
  %s87 = scalar_lea.vmem %s1, 704
  %88 = vst [vmem:[%s87] sm:$0xff] %v86
  %s89 = scalar_lea.vmem %s0, 400
  %v90 = vld [vmem:[%s89] sm:$0xff]
  %s91 = scalar_lea.vmem %s1, 368
  %92 = vst [vmem:[%s91] sm:$0xff] %v90
  %s93 = scalar_lea.vmem %s0, 848
  %v94 = vld [vmem:[%s93] sm:$0xff]
  %s95 = scalar_lea.vmem %s1, 816
  %96 = vst [vmem:[%s95] sm:$0xff] %v94
  %s97 = scalar_lea.vmem %s0, 48
  %v98 = vld [vmem:[%s97] sm:$0xff]
  %s99 = scalar_lea.vmem %s1, 48
  %100 = vst [vmem:[%s99] sm:$0xff] %v98
  %s101 = scalar_lea.vmem %s0, 496
  %v102 = vld [vmem:[%s101] sm:$0xff]
  %s103 = scalar_lea.vmem %s1, 496
  %104 = vst [vmem:[%s103] sm:$0xff] %v102
  %s105 = scalar_lea.vmem %s0, 160
  %v106 = vld [vmem:[%s105] sm:$0xff]
  %s107 = scalar_lea.vmem %s1, 160
  %108 = vst [vmem:[%s107] sm:$0xff] %v106
  %s109 = scalar_lea.vmem %s0, 608
  %v110 = vld [vmem:[%s109] sm:$0xff]
  %s111 = scalar_lea.vmem %s1, 608
  %112 = vst [vmem:[%s111] sm:$0xff] %v110
  %s113 = scalar_lea.vmem %s0, 272
  %v114 = vld [vmem:[%s113] sm:$0xff]
  %s115 = scalar_lea.vmem %s1, 272
  %116 = vst [vmem:[%s115] sm:$0xff] %v114
  %s117 = scalar_lea.vmem %s0, 720
  %v118 = vld [vmem:[%s117] sm:$0xff]
  %s119 = scalar_lea.vmem %s1, 720
  %120 = vst [vmem:[%s119] sm:$0xff] %v118
  %s121 = scalar_lea.vmem %s0, 384
  %v122 = vld [vmem:[%s121] sm:$0xff]
  %s123 = scalar_lea.vmem %s1, 384
  %124 = vst [vmem:[%s123] sm:$0xff] %v122
  %s125 = scalar_lea.vmem %s0, 832
  %v126 = vld [vmem:[%s125] sm:$0xff]
  %s127 = scalar_lea.vmem %s1, 832
  %128 = vst [vmem:[%s127] sm:$0xff] %v126
  %s129 = scalar_lea.vmem %s0, 32
  %v130 = vld [vmem:[%s129] sm:$0xff]
  %s131 = scalar_lea.vmem %s1, 64
  %132 = vst [vmem:[%s131] sm:$0xff] %v130
  %s133 = scalar_lea.vmem %s0, 480
  %v134 = vld [vmem:[%s133] sm:$0xff]
  %s135 = scalar_lea.vmem %s1, 512
  %136 = vst [vmem:[%s135] sm:$0xff] %v134
  %s137 = scalar_lea.vmem %s0, 144
  %v138 = vld [vmem:[%s137] sm:$0xff]
  %s139 = scalar_lea.vmem %s1, 176
  %140 = vst [vmem:[%s139] sm:$0xff] %v138
  %s141 = scalar_lea.vmem %s0, 592
  %v142 = vld [vmem:[%s141] sm:$0xff]
  %s143 = scalar_lea.vmem %s1, 624
  %144 = vst [vmem:[%s143] sm:$0xff] %v142
  %s145 = scalar_lea.vmem %s0, 256
  %v146 = vld [vmem:[%s145] sm:$0xff]
  %s147 = scalar_lea.vmem %s1, 288
  %148 = vst [vmem:[%s147] sm:$0xff] %v146
  %s149 = scalar_lea.vmem %s0, 704
  %v150 = vld [vmem:[%s149] sm:$0xff]
  %s151 = scalar_lea.vmem %s1, 736
  %152 = vst [vmem:[%s151] sm:$0xff] %v150
  %s153 = scalar_lea.vmem %s0, 368
  %v154 = vld [vmem:[%s153] sm:$0xff]
  %s155 = scalar_lea.vmem %s1, 400
  %156 = vst [vmem:[%s155] sm:$0xff] %v154
  %s157 = scalar_lea.vmem %s0, 816
  %v158 = vld [vmem:[%s157] sm:$0xff]
  %s159 = scalar_lea.vmem %s1, 848
  %160 = vst [vmem:[%s159] sm:$0xff] %v158
  %s161 = scalar_lea.vmem %s0, 16
  %v162 = vld [vmem:[%s161] sm:$0xff]
  %s163 = scalar_lea.vmem %s1, 80
  %164 = vst [vmem:[%s163] sm:$0xff] %v162
  %s165 = scalar_lea.vmem %s0, 464
  %v166 = vld [vmem:[%s165] sm:$0xff]
  %s167 = scalar_lea.vmem %s1, 528
  %168 = vst [vmem:[%s167] sm:$0xff] %v166
  %s169 = scalar_lea.vmem %s0, 128
  %v170 = vld [vmem:[%s169] sm:$0xff]
  %s171 = scalar_lea.vmem %s1, 192
  %172 = vst [vmem:[%s171] sm:$0xff] %v170
  %s173 = scalar_lea.vmem %s0, 576
  %v174 = vld [vmem:[%s173] sm:$0xff]
  %s175 = scalar_lea.vmem %s1, 640
  %176 = vst [vmem:[%s175] sm:$0xff] %v174
  %s177 = scalar_lea.vmem %s0, 240
  %v178 = vld [vmem:[%s177] sm:$0xff]
  %s179 = scalar_lea.vmem %s1, 304
  %180 = vst [vmem:[%s179] sm:$0xff] %v178
  %s181 = scalar_lea.vmem %s0, 688
  %v182 = vld [vmem:[%s181] sm:$0xff]
  %s183 = scalar_lea.vmem %s1, 752
  %184 = vst [vmem:[%s183] sm:$0xff] %v182
  %s185 = scalar_lea.vmem %s0, 352
  %v186 = vld [vmem:[%s185] sm:$0xff]
  %s187 = scalar_lea.vmem %s1, 416
  %188 = vst [vmem:[%s187] sm:$0xff] %v186
  %s189 = scalar_lea.vmem %s0, 800
  %v190 = vld [vmem:[%s189] sm:$0xff]
  %s191 = scalar_lea.vmem %s1, 864
  %192 = vst [vmem:[%s191] sm:$0xff] %v190
  %v193 = vld [vmem:[%s0] sm:$0xff]
  %s194 = scalar_lea.vmem %s1, 96
  %195 = vst [vmem:[%s194] sm:$0xff] %v193
  %s196 = scalar_lea.vmem %s0, 448
  %v197 = vld [vmem:[%s196] sm:$0xff]
  %s198 = scalar_lea.vmem %s1, 544
  %199 = vst [vmem:[%s198] sm:$0xff] %v197
  %s200 = scalar_lea.vmem %s0, 112
  %v201 = vld [vmem:[%s200] sm:$0xff]
  %s202 = scalar_lea.vmem %s1, 208
  %203 = vst [vmem:[%s202] sm:$0xff] %v201
  %s204 = scalar_lea.vmem %s0, 560
  %v205 = vld [vmem:[%s204] sm:$0xff]
  %s206 = scalar_lea.vmem %s1, 656
  %207 = vst [vmem:[%s206] sm:$0xff] %v205
  %s208 = scalar_lea.vmem %s0, 224
  %v209 = vld [vmem:[%s208] sm:$0xff]
  %s210 = scalar_lea.vmem %s1, 320
  %211 = vst [vmem:[%s210] sm:$0xff] %v209
  %s212 = scalar_lea.vmem %s0, 672
  %v213 = vld [vmem:[%s212] sm:$0xff]
  %s214 = scalar_lea.vmem %s1, 768
  %215 = vst [vmem:[%s214] sm:$0xff] %v213
  %s216 = scalar_lea.vmem %s0, 336
  %v217 = vld [vmem:[%s216] sm:$0xff]
  %s218 = scalar_lea.vmem %s1, 432
  %219 = vst [vmem:[%s218] sm:$0xff] %v217
  %s220 = scalar_lea.vmem %s0, 784
  %v221 = vld [vmem:[%s220] sm:$0xff]
  %s222 = scalar_lea.vmem %s1, 880
  %223 = vst [vmem:[%s222] sm:$0xff] %v221
  %s224 = scalar_lea.vmem %s0, 104
  %v225 = vld [vmem:[%s224] sm:$0xff]
  %s226 = scalar_lea.vmem %s1, 8
  %227 = vst [vmem:[%s226] sm:$0xff] %v225
  %s228 = scalar_lea.vmem %s0, 552
  %v229 = vld [vmem:[%s228] sm:$0xff]
  %s230 = scalar_lea.vmem %s1, 456
  %231 = vst [vmem:[%s230] sm:$0xff] %v229
  %s232 = scalar_lea.vmem %s0, 216
  %v233 = vld [vmem:[%s232] sm:$0xff]
  %s234 = scalar_lea.vmem %s1, 120
  %235 = vst [vmem:[%s234] sm:$0xff] %v233
  %s236 = scalar_lea.vmem %s0, 664
  %v237 = vld [vmem:[%s236] sm:$0xff]
  %s238 = scalar_lea.vmem %s1, 568
  %239 = vst [vmem:[%s238] sm:$0xff] %v237
  %s240 = scalar_lea.vmem %s0, 328
  %v241 = vld [vmem:[%s240] sm:$0xff]
  %s242 = scalar_lea.vmem %s1, 232
  %243 = vst [vmem:[%s242] sm:$0xff] %v241
  %s244 = scalar_lea.vmem %s0, 776
  %v245 = vld [vmem:[%s244] sm:$0xff]
  %s246 = scalar_lea.vmem %s1, 680
  %247 = vst [vmem:[%s246] sm:$0xff] %v245
  %s248 = scalar_lea.vmem %s0, 440
  %v249 = vld [vmem:[%s248] sm:$0xff]
  %s250 = scalar_lea.vmem %s1, 344
  %251 = vst [vmem:[%s250] sm:$0xff] %v249
  %s252 = scalar_lea.vmem %s0, 888
  %v253 = vld [vmem:[%s252] sm:$0xff]
  %s254 = scalar_lea.vmem %s1, 792
  %255 = vst [vmem:[%s254] sm:$0xff] %v253
  %s256 = scalar_lea.vmem %s0, 88
  %v257 = vld [vmem:[%s256] sm:$0xff]
  %s258 = scalar_lea.vmem %s1, 24
  %259 = vst [vmem:[%s258] sm:$0xff] %v257
  %s260 = scalar_lea.vmem %s0, 536
  %v261 = vld [vmem:[%s260] sm:$0xff]
  %s262 = scalar_lea.vmem %s1, 472
  %263 = vst [vmem:[%s262] sm:$0xff] %v261
  %s264 = scalar_lea.vmem %s0, 200
  %v265 = vld [vmem:[%s264] sm:$0xff]
  %s266 = scalar_lea.vmem %s1, 136
  %267 = vst [vmem:[%s266] sm:$0xff] %v265
  %s268 = scalar_lea.vmem %s0, 648
  %v269 = vld [vmem:[%s268] sm:$0xff]
  %s270 = scalar_lea.vmem %s1, 584
  %271 = vst [vmem:[%s270] sm:$0xff] %v269
  %s272 = scalar_lea.vmem %s0, 312
  %v273 = vld [vmem:[%s272] sm:$0xff]
  %s274 = scalar_lea.vmem %s1, 248
  %275 = vst [vmem:[%s274] sm:$0xff] %v273
  %s276 = scalar_lea.vmem %s0, 760
  %v277 = vld [vmem:[%s276] sm:$0xff]
  %s278 = scalar_lea.vmem %s1, 696
  %279 = vst [vmem:[%s278] sm:$0xff] %v277
  %s280 = scalar_lea.vmem %s0, 424
  %v281 = vld [vmem:[%s280] sm:$0xff]
  %s282 = scalar_lea.vmem %s1, 360
  %283 = vst [vmem:[%s282] sm:$0xff] %v281
  %s284 = scalar_lea.vmem %s0, 872
  %v285 = vld [vmem:[%s284] sm:$0xff]
  %s286 = scalar_lea.vmem %s1, 808
  %287 = vst [vmem:[%s286] sm:$0xff] %v285
  %s288 = scalar_lea.vmem %s0, 72
  %v289 = vld [vmem:[%s288] sm:$0xff]
  %s290 = scalar_lea.vmem %s1, 40
  %291 = vst [vmem:[%s290] sm:$0xff] %v289
  %s292 = scalar_lea.vmem %s0, 520
  %v293 = vld [vmem:[%s292] sm:$0xff]
  %s294 = scalar_lea.vmem %s1, 488
  %295 = vst [vmem:[%s294] sm:$0xff] %v293
  %s296 = scalar_lea.vmem %s0, 184
  %v297 = vld [vmem:[%s296] sm:$0xff]
  %s298 = scalar_lea.vmem %s1, 152
  %299 = vst [vmem:[%s298] sm:$0xff] %v297
  %s300 = scalar_lea.vmem %s0, 632
  %v301 = vld [vmem:[%s300] sm:$0xff]
  %s302 = scalar_lea.vmem %s1, 600
  %303 = vst [vmem:[%s302] sm:$0xff] %v301
  %s304 = scalar_lea.vmem %s0, 296
  %v305 = vld [vmem:[%s304] sm:$0xff]
  %s306 = scalar_lea.vmem %s1, 264
  %307 = vst [vmem:[%s306] sm:$0xff] %v305
  %s308 = scalar_lea.vmem %s0, 744
  %v309 = vld [vmem:[%s308] sm:$0xff]
  %s310 = scalar_lea.vmem %s1, 712
  %311 = vst [vmem:[%s310] sm:$0xff] %v309
  %s312 = scalar_lea.vmem %s0, 408
  %v313 = vld [vmem:[%s312] sm:$0xff]
  %s314 = scalar_lea.vmem %s1, 376
  %315 = vst [vmem:[%s314] sm:$0xff] %v313
  %s316 = scalar_lea.vmem %s0, 856
  %v317 = vld [vmem:[%s316] sm:$0xff]
  %s318 = scalar_lea.vmem %s1, 824
  %319 = vst [vmem:[%s318] sm:$0xff] %v317
  %s320 = scalar_lea.vmem %s0, 56
  %v321 = vld [vmem:[%s320] sm:$0xff]
  %s322 = scalar_lea.vmem %s1, 56
  %323 = vst [vmem:[%s322] sm:$0xff] %v321
  %s324 = scalar_lea.vmem %s0, 504
  %v325 = vld [vmem:[%s324] sm:$0xff]
  %s326 = scalar_lea.vmem %s1, 504
  %327 = vst [vmem:[%s326] sm:$0xff] %v325
  %s328 = scalar_lea.vmem %s0, 168
  %v329 = vld [vmem:[%s328] sm:$0xff]
  %s330 = scalar_lea.vmem %s1, 168
  %331 = vst [vmem:[%s330] sm:$0xff] %v329
  %s332 = scalar_lea.vmem %s0, 616
  %v333 = vld [vmem:[%s332] sm:$0xff]
  %s334 = scalar_lea.vmem %s1, 616
  %335 = vst [vmem:[%s334] sm:$0xff] %v333
  %s336 = scalar_lea.vmem %s0, 280
  %v337 = vld [vmem:[%s336] sm:$0xff]
  %s338 = scalar_lea.vmem %s1, 280
  %339 = vst [vmem:[%s338] sm:$0xff] %v337
  %s340 = scalar_lea.vmem %s0, 728
  %v341 = vld [vmem:[%s340] sm:$0xff]
  %s342 = scalar_lea.vmem %s1, 728
  %343 = vst [vmem:[%s342] sm:$0xff] %v341
  %s344 = scalar_lea.vmem %s0, 392
  %v345 = vld [vmem:[%s344] sm:$0xff]
  %s346 = scalar_lea.vmem %s1, 392
  %347 = vst [vmem:[%s346] sm:$0xff] %v345
  %s348 = scalar_lea.vmem %s0, 840
  %v349 = vld [vmem:[%s348] sm:$0xff]
  %s350 = scalar_lea.vmem %s1, 840
  %351 = vst [vmem:[%s350] sm:$0xff] %v349
  %s352 = scalar_lea.vmem %s0, 40
  %v353 = vld [vmem:[%s352] sm:$0xff]
  %s354 = scalar_lea.vmem %s1, 72
  %355 = vst [vmem:[%s354] sm:$0xff] %v353
  %s356 = scalar_lea.vmem %s0, 488
  %v357 = vld [vmem:[%s356] sm:$0xff]
  %s358 = scalar_lea.vmem %s1, 520
  %359 = vst [vmem:[%s358] sm:$0xff] %v357
  %s360 = scalar_lea.vmem %s0, 152
  %v361 = vld [vmem:[%s360] sm:$0xff]
  %s362 = scalar_lea.vmem %s1, 184
  %363 = vst [vmem:[%s362] sm:$0xff] %v361
  %s364 = scalar_lea.vmem %s0, 600
  %v365 = vld [vmem:[%s364] sm:$0xff]
  %s366 = scalar_lea.vmem %s1, 632
  %367 = vst [vmem:[%s366] sm:$0xff] %v365
  %s368 = scalar_lea.vmem %s0, 264
  %v369 = vld [vmem:[%s368] sm:$0xff]
  %s370 = scalar_lea.vmem %s1, 296
  %371 = vst [vmem:[%s370] sm:$0xff] %v369
  %s372 = scalar_lea.vmem %s0, 712
  %v373 = vld [vmem:[%s372] sm:$0xff]
  %s374 = scalar_lea.vmem %s1, 744
  %375 = vst [vmem:[%s374] sm:$0xff] %v373
  %s376 = scalar_lea.vmem %s0, 376
  %v377 = vld [vmem:[%s376] sm:$0xff]
  %s378 = scalar_lea.vmem %s1, 408
  %379 = vst [vmem:[%s378] sm:$0xff] %v377
  %s380 = scalar_lea.vmem %s0, 824
  %v381 = vld [vmem:[%s380] sm:$0xff]
  %s382 = scalar_lea.vmem %s1, 856
  %383 = vst [vmem:[%s382] sm:$0xff] %v381
  %s384 = scalar_lea.vmem %s0, 24
  %v385 = vld [vmem:[%s384] sm:$0xff]
  %s386 = scalar_lea.vmem %s1, 88
  %387 = vst [vmem:[%s386] sm:$0xff] %v385
  %s388 = scalar_lea.vmem %s0, 472
  %v389 = vld [vmem:[%s388] sm:$0xff]
  %s390 = scalar_lea.vmem %s1, 536
  %391 = vst [vmem:[%s390] sm:$0xff] %v389
  %s392 = scalar_lea.vmem %s0, 136
  %v393 = vld [vmem:[%s392] sm:$0xff]
  %s394 = scalar_lea.vmem %s1, 200
  %395 = vst [vmem:[%s394] sm:$0xff] %v393
  %s396 = scalar_lea.vmem %s0, 584
  %v397 = vld [vmem:[%s396] sm:$0xff]
  %s398 = scalar_lea.vmem %s1, 648
  %399 = vst [vmem:[%s398] sm:$0xff] %v397
  %s400 = scalar_lea.vmem %s0, 248
  %v401 = vld [vmem:[%s400] sm:$0xff]
  %s402 = scalar_lea.vmem %s1, 312
  %403 = vst [vmem:[%s402] sm:$0xff] %v401
  %s404 = scalar_lea.vmem %s0, 696
  %v405 = vld [vmem:[%s404] sm:$0xff]
  %s406 = scalar_lea.vmem %s1, 760
  %407 = vst [vmem:[%s406] sm:$0xff] %v405
  %s408 = scalar_lea.vmem %s0, 360
  %v409 = vld [vmem:[%s408] sm:$0xff]
  %s410 = scalar_lea.vmem %s1, 424
  %411 = vst [vmem:[%s410] sm:$0xff] %v409
  %s412 = scalar_lea.vmem %s0, 808
  %v413 = vld [vmem:[%s412] sm:$0xff]
  %s414 = scalar_lea.vmem %s1, 872
  %415 = vst [vmem:[%s414] sm:$0xff] %v413
  %s416 = scalar_lea.vmem %s0, 8
  %v417 = vld [vmem:[%s416] sm:$0xff]
  %s418 = scalar_lea.vmem %s1, 104
  %419 = vst [vmem:[%s418] sm:$0xff] %v417
  %s420 = scalar_lea.vmem %s0, 456
  %v421 = vld [vmem:[%s420] sm:$0xff]
  %s422 = scalar_lea.vmem %s1, 552
  %423 = vst [vmem:[%s422] sm:$0xff] %v421
  %s424 = scalar_lea.vmem %s0, 120
  %v425 = vld [vmem:[%s424] sm:$0xff]
  %s426 = scalar_lea.vmem %s1, 216
  %427 = vst [vmem:[%s426] sm:$0xff] %v425
  %s428 = scalar_lea.vmem %s0, 568
  %v429 = vld [vmem:[%s428] sm:$0xff]
  %s430 = scalar_lea.vmem %s1, 664
  %431 = vst [vmem:[%s430] sm:$0xff] %v429
  %s432 = scalar_lea.vmem %s0, 232
  %v433 = vld [vmem:[%s432] sm:$0xff]
  %s434 = scalar_lea.vmem %s1, 328
  %435 = vst [vmem:[%s434] sm:$0xff] %v433
  %s436 = scalar_lea.vmem %s0, 680
  %v437 = vld [vmem:[%s436] sm:$0xff]
  %s438 = scalar_lea.vmem %s1, 776
  %439 = vst [vmem:[%s438] sm:$0xff] %v437
  %s440 = scalar_lea.vmem %s0, 344
  %v441 = vld [vmem:[%s440] sm:$0xff]
  %s442 = scalar_lea.vmem %s1, 440
  %443 = vst [vmem:[%s442] sm:$0xff] %v441
  %s444 = scalar_lea.vmem %s0, 792
  %v445 = vld [vmem:[%s444] sm:$0xff]
  %s446 = scalar_lea.vmem %s1, 888
  %447 = vst [vmem:[%s446] sm:$0xff] %v445

</llo_original>
